<compile_context>
chip_gen: v6e
topology: v6e:2x2x1
jax: 0.10.0
libtpu: 0.0.40
codegen_flags: <defaults>
</compile_context>

<pallas_src>
import functools

import jax
import jax.numpy as jnp
from jax.experimental import pallas as pl
from jax.experimental.pallas import tpu as pltpu

LANE = 128


# ----------------------------- Pallas kernel ------------------------------- #
def _fused_hgnn_kernel(l_ref, x_ref, lsum_ref, w0_ref, b0_ref, w1_ref, b1_ref,
                       emb_ref, out_ref):
    """Fused 2-layer HGNN:

      emb = relu((L @ X) @ W0 + rowsum(L) * b0)   # re-associated layer 0
      out =  L @ (emb @ W1 + b1)                  # layer 1 (is_last: no relu)

    l_ref:    (N, N)        bf16  smoothing operator
    x_ref:    (N, Cin_p)    bf16  vertex features (lane-padded)
    lsum_ref: (N, 1)        f32   row sums of L (for the bias re-association)
    w0_ref:   (Cin_p, Ch_p) bf16
    b0_ref:   (1, Ch_p)     f32
    w1_ref:   (Ch_p, Co_p)  bf16
    b1_ref:   (1, Co_p)     f32
    emb_ref:  (N, Ch_p)     f32   hidden embedding (layer-0 output)
    out_ref:  (N, Co_p)     f32   logits
    """
    L = l_ref[...]                                                  # bf16 (N, N)

    # ---- layer 0: contract L with the *smaller* channel dim first ----
    lx = jnp.dot(L, x_ref[...], preferred_element_type=jnp.float32)  # (N, Cin_p) f32
    emb = jnp.dot(lx.astype(jnp.bfloat16), w0_ref[...],
                  preferred_element_type=jnp.float32)                # (N, Ch_p) f32
    emb = emb + lsum_ref[...] * b0_ref[...]     # L @ (1_N b0^T) == rowsum(L) * b0
    emb = jnp.maximum(emb, 0.0)                 # ReLU (padding lanes stay 0)
    emb_ref[...] = emb

    # ---- layer 1: small theta first, then the N^2 matmul over Cout ----
    y1 = jnp.dot(emb.astype(jnp.bfloat16), w1_ref[...],
                 preferred_element_type=jnp.float32) + b1_ref[...]   # (N, Co_p)
    out_ref[...] = jnp.dot(L, y1.astype(jnp.bfloat16),
                           preferred_element_type=jnp.float32)       # (N, Co_p)


# ------------------------------ wrappers ----------------------------------- #
def _round_up(x: int, m: int) -> int:
    return ((x + m - 1) // m) * m


def _pad_last(a, to: int):
    pad = to - a.shape[-1]
    if pad == 0:
        return a
    return jnp.pad(a, [(0, 0)] * (a.ndim - 1) + [(0, pad)])


def _pad2(a, rows: int, cols: int):
    return jnp.pad(a, [(0, rows - a.shape[0]), (0, cols - a.shape[1])])


@jax.jit
def fused_hgnn_forward(params, X, L):
    """Run both HGNNConv layers in a single fused Pallas kernel.

    Returns (emb, out) with emb: (N, hid), out: (N, num_classes), both f32.
    """
    N = X.shape[0]
    cin, hid = params["W0"].shape
    cout = params["W1"].shape[1]
    cin_p, hid_p, cout_p = (_round_up(c, LANE) for c in (cin, hid, cout))

    L32 = L.astype(jnp.float32)
    lsum = jnp.sum(L32, axis=1, keepdims=True)                      # (N, 1) f32

    # bf16 operands for the MXU (f32 accumulation inside the kernel).
    L_bf = L32.astype(jnp.bfloat16)
    X_bf = _pad_last(X.astype(jnp.bfloat16), cin_p)
    W0_bf = _pad2(params["W0"].astype(jnp.bfloat16), cin_p, hid_p)
    W1_bf = _pad2(params["W1"].astype(jnp.bfloat16), hid_p, cout_p)
    b0 = _pad_last(params["b0"].astype(jnp.float32).reshape(1, hid), hid_p)
    b1 = _pad_last(params["b1"].astype(jnp.float32).reshape(1, cout), cout_p)

    vmem = pl.BlockSpec(memory_space=pltpu.MemorySpace.VMEM)

    flops = (2 * N * N * cin_p          # L @ X
             + 2 * N * cin_p * hid_p    # (L@X) @ W0
             + 2 * N * hid_p * cout_p   # emb @ W1
             + 2 * N * N * cout_p)      # L @ Y1
    bytes_accessed = (2 * (L_bf.size + X_bf.size + W0_bf.size + W1_bf.size)
                      + 4 * (lsum.size + b0.size + b1.size)
                      + 4 * (N * hid_p + N * cout_p))

    emb_p, out_p = pl.pallas_call(
        _fused_hgnn_kernel,
        out_shape=(jax.ShapeDtypeStruct((N, hid_p), jnp.float32),
                   jax.ShapeDtypeStruct((N, cout_p), jnp.float32)),
        in_specs=[vmem] * 7,
        out_specs=(vmem, vmem),
        compiler_params=pltpu.CompilerParams(vmem_limit_bytes=32 * 1024 * 1024),
        cost_estimate=pl.CostEstimate(flops=flops, transcendentals=0,
                                      bytes_accessed=bytes_accessed),
    )(L_bf, X_bf, lsum, W0_bf, b0, W1_bf, b1)

    return emb_p[:, :hid], out_p[:, :cout]


# ------------------------------ JAX glue ----------------------------------- #
def build_hgnn_laplacian(H, edge_w=None):
    """L = Dv^-1/2 H W_e De^-1 H^T Dv^-1/2 (the HGNN smoothing operator)."""
    H = H.astype(jnp.float32)
    n_v, n_e = H.shape
    if edge_w is None:
        edge_w = jnp.ones((n_e,), jnp.float32)
    dv = (H * edge_w[None, :]).sum(axis=1)  # vertex degrees
    de = H.sum(axis=0)                      # edge degrees
    dv_inv_sqrt = jnp.where(dv > 0, 1.0 / jnp.sqrt(dv), 0.0)
    de_inv = jnp.where(de > 0, 1.0 / de, 0.0)
    inner = (H * (edge_w * de_inv)[None, :]) @ H.T      # H W_e De^-1 H^T
    L = dv_inv_sqrt[:, None] * inner * dv_inv_sqrt[None, :]
    return L


def init_params(key, in_channels, hid_channels, num_classes):
    """Deterministic init matching nn.Linear's uniform(-1/sqrt(fan_in), ...)."""
    k0w, k0b, k1w, k1b = jax.random.split(key, 4)
    bound0 = 1.0 / jnp.sqrt(in_channels)
    bound1 = 1.0 / jnp.sqrt(hid_channels)
    return {
        "W0": jax.random.uniform(k0w, (in_channels, hid_channels), jnp.float32,
                                 -bound0, bound0),
        "b0": jax.random.uniform(k0b, (hid_channels,), jnp.float32, -bound0, bound0),
        "W1": jax.random.uniform(k1w, (hid_channels, num_classes), jnp.float32,
                                 -bound1, bound1),
        "b1": jax.random.uniform(k1b, (num_classes,), jnp.float32, -bound1, bound1),
    }


def my_hgnn_forward(params, X, L, get_emb=False):
    """MyHGNN.forward: layers0 (ReLU) -> layers1 (is_last), dropout = identity."""
    # TODO(synk): dropout (drop_rate=0.5) omitted — eval-mode identity.
    emb, out = fused_hgnn_forward(params, X, L)
    return emb if get_emb else out


# ------------------------------- driver ------------------------------------ #
if __name__ == "__main__":
    N, E = 32, 12                      # vertices, hyperedges
    in_channels, hid_channels, num_classes = 16, 32, 8

    key = jax.random.PRNGKey(0)
    k_x, k_h, k_p = jax.random.split(key, 3)

    # vertex features
    X = jax.random.normal(k_x, (N, in_channels), jnp.float32)

    # synthetic hypergraph incidence matrix (every vertex in >=1 edge,
    # every edge has >=1 vertex)
    H = jax.random.bernoulli(k_h, 0.3, (N, E)).astype(jnp.float32)
    row_idx = jnp.arange(N)
    H = H.at[row_idx, row_idx % E].set(1.0)

    L = build_hgnn_laplacian(H)
    params = init_params(k_p, in_channels, hid_channels, num_classes)

    out = jax.block_until_ready(my_hgnn_forward(params, X, L, get_emb=False))
    assert out.shape == (N, num_classes), out.shape
    assert out.dtype == jnp.float32

    emb = jax.block_until_ready(my_hgnn_forward(params, X, L, get_emb=True))
    assert emb.shape == (N, hid_channels), emb.shape
    assert jnp.all(emb >= 0.0)          # ReLU'd hidden embedding

    print("KERNEL_OK")
</pallas_src>

<mosaic_0001>
module attributes {stable_mosaic.version = 11 : i64} {
  func.func @_fused_hgnn_kernel(%arg0: memref<32x32xbf16, #tpu.memory_space<vmem>>, %arg1: memref<32x128xbf16, #tpu.memory_space<vmem>>, %arg2: memref<32x1xf32, #tpu.memory_space<vmem>>, %arg3: memref<128x128xbf16, #tpu.memory_space<vmem>>, %arg4: memref<1x128xf32, #tpu.memory_space<vmem>>, %arg5: memref<128x128xbf16, #tpu.memory_space<vmem>>, %arg6: memref<1x128xf32, #tpu.memory_space<vmem>>, %arg7: memref<32x128xf32, #tpu.memory_space<vmem>>, %arg8: memref<32x128xf32, #tpu.memory_space<vmem>>) attributes {dimension_semantics = [], scalar_prefetch = 0 : i64, scratch_operands = 0 : i64, tpu.core_type = #tpu.core_type<tc>} {
    %c0 = arith.constant 0 : index
    %c0_0 = arith.constant 0 : index
    %0 = vector.load %arg0[%c0, %c0_0] : memref<32x32xbf16, #tpu.memory_space<vmem>>, vector<32x32xbf16>
    %c0_1 = arith.constant 0 : index
    %c0_2 = arith.constant 0 : index
    %1 = vector.load %arg1[%c0_1, %c0_2] : memref<32x128xbf16, #tpu.memory_space<vmem>>, vector<32x128xbf16>
    %cst = arith.constant dense<0.000000e+00> : vector<32x128xf32>
    %2 = tpu.matmul %0, %1, %cst {dimension_numbers = #tpu.dot_dimension_numbers<[1], [0], [0], [1], [0, 0, 1, 1], [], []>} : vector<32x32xbf16>, vector<32x128xbf16>, vector<32x128xf32> -> vector<32x128xf32>
    %3 = arith.truncf %2 : vector<32x128xf32> to vector<32x128xbf16>
    %c0_3 = arith.constant 0 : index
    %c0_4 = arith.constant 0 : index
    %4 = vector.load %arg3[%c0_3, %c0_4] : memref<128x128xbf16, #tpu.memory_space<vmem>>, vector<128x128xbf16>
    %cst_5 = arith.constant dense<0.000000e+00> : vector<32x128xf32>
    %5 = tpu.matmul %3, %4, %cst_5 {dimension_numbers = #tpu.dot_dimension_numbers<[1], [0], [0], [1], [0, 0, 1, 1], [], []>} : vector<32x128xbf16>, vector<128x128xbf16>, vector<32x128xf32> -> vector<32x128xf32>
    %c0_6 = arith.constant 0 : index
    %c0_7 = arith.constant 0 : index
    %6 = vector.load %arg2[%c0_6, %c0_7] : memref<32x1xf32, #tpu.memory_space<vmem>>, vector<32x1xf32>
    %c0_8 = arith.constant 0 : index
    %c0_9 = arith.constant 0 : index
    %7 = vector.load %arg4[%c0_8, %c0_9] : memref<1x128xf32, #tpu.memory_space<vmem>>, vector<1x128xf32>
    %8 = vector.broadcast %6 : vector<32x1xf32> to vector<32x128xf32>
    %9 = vector.broadcast %7 : vector<1x128xf32> to vector<32x128xf32>
    %10 = arith.mulf %8, %9 : vector<32x128xf32>
    %11 = arith.addf %5, %10 : vector<32x128xf32>
    %cst_10 = arith.constant 0.000000e+00 : f32
    %12 = vector.broadcast %cst_10 : f32 to vector<32x128xf32>
    %13 = arith.maximumf %11, %12 : vector<32x128xf32>
    %c0_11 = arith.constant 0 : index
    %c0_12 = arith.constant 0 : index
    %14 = vector.load %arg7[%c0_11, %c0_12] : memref<32x128xf32, #tpu.memory_space<vmem>>, vector<32x128xf32>
    tpu.vector_store %arg7[%c0_11, %c0_12], %13 {strides = array<i32>} : memref<32x128xf32, #tpu.memory_space<vmem>>, vector<32x128xf32>,
    %15 = arith.truncf %13 : vector<32x128xf32> to vector<32x128xbf16>
    %c0_13 = arith.constant 0 : index
    %c0_14 = arith.constant 0 : index
    %16 = vector.load %arg5[%c0_13, %c0_14] : memref<128x128xbf16, #tpu.memory_space<vmem>>, vector<128x128xbf16>
    %cst_15 = arith.constant dense<0.000000e+00> : vector<32x128xf32>
    %17 = tpu.matmul %15, %16, %cst_15 {dimension_numbers = #tpu.dot_dimension_numbers<[1], [0], [0], [1], [0, 0, 1, 1], [], []>} : vector<32x128xbf16>, vector<128x128xbf16>, vector<32x128xf32> -> vector<32x128xf32>
    %c0_16 = arith.constant 0 : index
    %c0_17 = arith.constant 0 : index
    %18 = vector.load %arg6[%c0_16, %c0_17] : memref<1x128xf32, #tpu.memory_space<vmem>>, vector<1x128xf32>
    %19 = vector.broadcast %18 : vector<1x128xf32> to vector<32x128xf32>
    %20 = arith.addf %17, %19 : vector<32x128xf32>
    %21 = arith.truncf %20 : vector<32x128xf32> to vector<32x128xbf16>
    %cst_18 = arith.constant dense<0.000000e+00> : vector<32x128xf32>
    %22 = tpu.matmul %0, %21, %cst_18 {dimension_numbers = #tpu.dot_dimension_numbers<[1], [0], [0], [1], [0, 0, 1, 1], [], []>} : vector<32x32xbf16>, vector<32x128xbf16>, vector<32x128xf32> -> vector<32x128xf32>
    %c0_19 = arith.constant 0 : index
    %c0_20 = arith.constant 0 : index
    %23 = vector.load %arg8[%c0_19, %c0_20] : memref<32x128xf32, #tpu.memory_space<vmem>>, vector<32x128xf32>
    tpu.vector_store %arg8[%c0_19, %c0_20], %22 {strides = array<i32>} : memref<32x128xf32, #tpu.memory_space<vmem>>, vector<32x128xf32>,
    return
  }
}

</mosaic_0001>

<llo_original>
// kernel: fused_hgnn_forward.1
$region0: #{fused_hgnn_forward.1}
  #allocation0 [shape = 'u32[]', space=smem, size = 0x4, offset = 0x4, fixed_abs, tag = 'smem constant byte address 0x4 - core index']
  #allocation1 [shape = 'u32[144,128]{1,0:T(1,128)}', space=vmem, size = 0x12000, scoped, tag = 'internal scratch']
  %s0 = inlined_call_operand.vmem [shape: bf16[32,32], index: 0, kind: input, shape index: {}]
  %s1 = inlined_call_operand.vmem [shape: bf16[32,128], index: 1, kind: input, shape index: {}]
  %s2 = inlined_call_operand.vmem [shape: f32[32,1], index: 2, kind: input, shape index: {}]
  %s3 = inlined_call_operand.vmem [shape: bf16[128,128], index: 3, kind: input, shape index: {}]
  %s4 = inlined_call_operand.vmem [shape: f32[1,128], index: 4, kind: input, shape index: {}]
  %s5 = inlined_call_operand.vmem [shape: bf16[128,128], index: 5, kind: input, shape index: {}]
  %s6 = inlined_call_operand.vmem [shape: f32[1,128], index: 6, kind: input, shape index: {}]
  %s7 = inlined_call_operand.hbm [shape: f32[32,128], index: 7, kind: output, shape index: {0}]
  %s8 = inlined_call_operand.vmem [shape: f32[32,128], index: 8, kind: output, shape index: {1}]
  %9 = xla_tuple %s7, %s8
  %s10 = sld [smem:[#allocation0]]
  $region46: #{fused_hgnn_forward.1} parent=0
    _
  %s12 = ssub.s32 1, %s10
  %s13 = scalar_select 0, %s12, %s10
  $region1: #{fused_hgnn_forward.1} parent=0
    #allocation2 [shape = 'u8[16384]{0}', space=vmem, size = 0x4000, scoped, tag = 'output window, operand 0, single buffered']
    #allocation3 [shape = 's32[1]{0}', space=sflag, size = 0x4, scoped, tag = 'scoped memory for fused_hgnn_forward.1']
    %14 = vsyncpa [#allocation3], 0
    // Predicated region
    $region2: #{fused_hgnn_forward.1} parent=1 // pred_check
      _
    $region3: #{fused_hgnn_forward.1} parent=1 // pred_check_branch
      %16 = sbr.rel (0) target = $region5
    $region4: #{fused_hgnn_forward.1} parent=1 // pred_region
      _
    $region5: #{fused_hgnn_forward.1} parent=1 // pred_fallthru
      _
    // Predicated region
    $region6: #{fused_hgnn_forward.1} parent=1 // pred_check
      _
    $region7: #{fused_hgnn_forward.1} parent=1 // pred_check_branch
      %18 = sbr.rel (0) target = $region9
    $region8: #{fused_hgnn_forward.1} parent=1 // pred_region
      _
    $region9: #{fused_hgnn_forward.1} parent=1 // pred_fallthru
      _
    // Predicated region
    $region10: #{fused_hgnn_forward.1} parent=1 // pred_check
      _
    $region11: #{fused_hgnn_forward.1} parent=1 // pred_check_branch
      %20 = sbr.rel (0) target = $region13
    $region12: #{fused_hgnn_forward.1} parent=1 // pred_region
      _
    $region13: #{fused_hgnn_forward.1} parent=1 // pred_fallthru
      _
    // Predicated region
    $region14: #{fused_hgnn_forward.1} parent=1 // pred_check
      _
    $region15: #{fused_hgnn_forward.1} parent=1 // pred_check_branch
      %22 = sbr.rel (0) target = $region17
    $region16: #{fused_hgnn_forward.1} parent=1 // pred_region
      _
    $region17: #{fused_hgnn_forward.1} parent=1 // pred_fallthru
      _
    // Predicated region
    $region18: #{fused_hgnn_forward.1} parent=1 // pred_check
      _
    $region19: #{fused_hgnn_forward.1} parent=1 // pred_check_branch
      %24 = sbr.rel (0) target = $region21
    $region20: #{fused_hgnn_forward.1} parent=1 // pred_region
      _
    $region21: #{fused_hgnn_forward.1} parent=1 // pred_fallthru
      _
    // Predicated region
    $region22: #{fused_hgnn_forward.1} parent=1 // pred_check
      _
    $region23: #{fused_hgnn_forward.1} parent=1 // pred_check_branch
      %26 = sbr.rel (0) target = $region25
    $region24: #{fused_hgnn_forward.1} parent=1 // pred_region
      _
    $region25: #{fused_hgnn_forward.1} parent=1 // pred_fallthru
      _
    // Predicated region
    $region26: #{fused_hgnn_forward.1} parent=1 // pred_check
      _
    $region27: #{fused_hgnn_forward.1} parent=1 // pred_check_branch
      %28 = sbr.rel (0) target = $region29
    $region28: #{fused_hgnn_forward.1} parent=1 // pred_region
      _
    $region29: #{fused_hgnn_forward.1} parent=1 // pred_fallthru
      _
    %v30 = vld [vmem:[%s0] sm:$0xf]
    %v31 = vld [vmem:[%s0 + $0x4] sm:$0xf]
    %v32 = vld [vmem:[%s0 + $0x8] sm:$0xf]
    %v33 = vld [vmem:[%s0 + $0xc] sm:$0xf]
    %v34 = vld [vmem:[%s1] sm:$0xf]
    %v35 = vld [vmem:[%s1 + $0x4] sm:$0xf]
    %v36 = vld [vmem:[%s1 + $0x8] sm:$0xf]
    %v37 = vld [vmem:[%s1 + $0xc] sm:$0xf]
    %v42 = vunpack.c.l.b16 %v30
    %v43 = vunpack.c.l.b16 %v31
    %v44 = vunpack.c.l.b16 %v32
    %v45 = vunpack.c.l.b16 %v33
    %v46 = vpack.c.b16 %v43, %v42
    %v47 = vpack.c.b16 %v45, %v44
    %v52 = vunpack.c.l.b16 %v34
    %v53 = vunpack.c.l.b16 %v35
    %v54 = vunpack.c.l.b16 %v36
    %v55 = vunpack.c.l.b16 %v37
    %v56 = vpack.c.b16 %v53, %v52
    %v57 = vpack.c.b16 %v55, %v54
    %vm60 = vcmask 261120
    %v62 = vsel %vm60, %v46, 0
    %v65 = vsel %vm60, %v47, 0
    %67 = vmatprep.subr.bf16.mxu0 0
    %68 = vmatpush1.bf16.msra.mxu0 0
    %69 = vmatprep.subr.bf16.mxu0 0
    %70 = vmatpush1.bf16.msra.mxu0 0
    %71 = vmatprep.subr.bf16.mxu0 0
    %72 = vmatpush1.bf16.msra.mxu0 0
    %73 = vmatprep.subr.bf16.mxu0 0
    %74 = vmatpush1.bf16.msra.mxu0 0
    %75 = vmatprep.subr.bf16.mxu0 0
    %76 = vmatpush1.bf16.msra.mxu0 0
    %77 = vmatprep.subr.bf16.mxu0 0
    %78 = vmatpush1.bf16.msra.mxu0 0
    %79 = vmatprep.subr.bf16.mxu0 0
    %80 = vmatpush1.bf16.msra.mxu0 %v57
    %81 = vmatprep.subr.bf16.mxu0 0
    %82 = vmatpush1.bf16.msra.mxu0 %v56
    %83 = vmatprep.subr.bf16.mxu0 0
    %84 = vmatpush2.bf16.msra.mxu0 0
    %85 = vmatprep.subr.bf16.mxu0 0
    %86 = vmatpush2.bf16.msra.mxu0 0
    %87 = vmatprep.subr.bf16.mxu0 0
    %88 = vmatpush2.bf16.msra.mxu0 0
    %89 = vmatprep.subr.bf16.mxu0 0
    %90 = vmatpush2.bf16.msra.mxu0 0
    %91 = vmatprep.subr.bf16.mxu0 0
    %92 = vmatpush2.bf16.msra.mxu0 0
    %93 = vmatprep.subr.bf16.mxu0 0
    %94 = vmatpush2.bf16.msra.mxu0 0
    %95 = vmatprep.subr.bf16.mxu0 0
    %96 = vmatpush2.bf16.msra.mxu0 0
    %97 = vmatprep.subr.bf16.mxu0 0
    %98 = vmatpush2.bf16.msra.mxu0 0
    %99 = vmatprep.mubr.bf16.mxu0 0
    %100 = vmatmul.mubr.bf16.gmra.mxu0 %v62
    %v101 = vpop.f32.mrf.mxu0
    %v102 = vadd.f32 0.0, %v101
    %v103 = vpop.f32.mrf.mxu0
    %v104 = vpop.f32.mrf.mxu0
    %v105 = vadd.f32 0.0, %v104
    %v106 = vpop.f32.mrf.mxu0
    %107 = vmatprep.mubr.bf16.mxu0 0
    %108 = vmatmul.mubr.bf16.gmra.mxu0 %v65
    %v109 = vpop.f32.mrf.mxu0
    %v110 = vadd.f32 0.0, %v109
    %v111 = vpop.f32.mrf.mxu0
    %v112 = vpop.f32.mrf.mxu0
    %v113 = vadd.f32 0.0, %v112
    %v114 = vpop.f32.mrf.mxu0
    %115 = vdwg.mxu0
    %v116 = vpack.c.bf16 %v105, %v102
    %v117 = vpack.c.bf16 %v113, %v110
    %v118 = vld [vmem:[%s3] sm:$0xf]
    %v119 = vld [vmem:[%s3 + $0x4] sm:$0xf]
    %v120 = vld [vmem:[%s3 + $0x8] sm:$0xf]
    %v121 = vld [vmem:[%s3 + $0xc] sm:$0xf]
    %v122 = vld [vmem:[%s3 + $0x10] sm:$0xf]
    %v123 = vld [vmem:[%s3 + $0x14] sm:$0xf]
    %v124 = vld [vmem:[%s3 + $0x18] sm:$0xf]
    %v125 = vld [vmem:[%s3 + $0x1c] sm:$0xf]
    %v126 = vld [vmem:[%s3 + $0x20] sm:$0xf]
    %v127 = vld [vmem:[%s3 + $0x24] sm:$0xf]
    %v128 = vld [vmem:[%s3 + $0x28] sm:$0xf]
    %v129 = vld [vmem:[%s3 + $0x2c] sm:$0xf]
    %v130 = vld [vmem:[%s3 + $0x30] sm:$0xf]
    %v131 = vld [vmem:[%s3 + $0x34] sm:$0xf]
    %v132 = vld [vmem:[%s3 + $0x38] sm:$0xf]
    %v133 = vld [vmem:[%s3 + $0x3c] sm:$0xf]
    %v134 = vld [vmem:[%s2] sm:$0xff]
    %v135 = vld [vmem:[%s2 + $0x8] sm:$0xff]
    %v136 = vld [vmem:[%s2 + $0x10] sm:$0xff]
    %v137 = vld [vmem:[%s2 + $0x18] sm:$0xff]
    %v138 = vld [vmem:[%s4] sm:$0x1]
    %140 = vset.pattern.permute.xlu0 0
    %141 = vperm.xlu0 %140, %v134
    %v142 = vpop.permute.xlu0 %141
    %145 = vset.pattern.permute.xlu0 0
    %146 = vperm.xlu0 %145, %v135
    %v147 = vpop.permute.xlu0 %146
    %150 = vset.pattern.permute.xlu0 0
    %151 = vperm.xlu0 %150, %v136
    %v152 = vpop.permute.xlu0 %151
    %155 = vset.pattern.permute.xlu0 0
    %156 = vperm.xlu0 %155, %v137
    %v157 = vpop.permute.xlu0 %156
    %v160 = vlaneseq
    %v161 = vshrl.u32 %v160, 7
    %v162 = vsub.s32 0, %v161
    %v163 = vrot.slane %v138, %v162
    %v165 = vmul.f32 %v142, %v163
    %v166 = vmul.f32 %v147, %v163
    %v167 = vmul.f32 %v152, %v163
    %v168 = vmul.f32 %v157, %v163
    %v185 = vunpack.c.l.b16 %v118
    %v186 = vunpack.c.l.b16 %v119
    %v187 = vunpack.c.l.b16 %v120
    %v188 = vunpack.c.l.b16 %v121
    %v189 = vunpack.c.l.b16 %v122
    %v190 = vunpack.c.l.b16 %v123
    %v191 = vunpack.c.l.b16 %v124
    %v192 = vunpack.c.l.b16 %v125
    %v193 = vunpack.c.l.b16 %v126
    %v194 = vunpack.c.l.b16 %v127
    %v195 = vunpack.c.l.b16 %v128
    %v196 = vunpack.c.l.b16 %v129
    %v197 = vunpack.c.l.b16 %v130
    %v198 = vunpack.c.l.b16 %v131
    %v199 = vunpack.c.l.b16 %v132
    %v200 = vunpack.c.l.b16 %v133
    %v201 = vpack.c.b16 %v186, %v185
    %v202 = vpack.c.b16 %v188, %v187
    %v203 = vpack.c.b16 %v190, %v189
    %v204 = vpack.c.b16 %v192, %v191
    %v205 = vpack.c.b16 %v194, %v193
    %v206 = vpack.c.b16 %v196, %v195
    %v207 = vpack.c.b16 %v198, %v197
    %v208 = vpack.c.b16 %v200, %v199
    %217 = vmatprep.subr.bf16.mxu0 0
    %218 = vmatpush1.bf16.msra.mxu0 %v208
    %219 = vmatprep.subr.bf16.mxu0 0
    %220 = vmatpush1.bf16.msra.mxu0 %v207
    %221 = vmatprep.subr.bf16.mxu0 0
    %222 = vmatpush1.bf16.msra.mxu0 %v206
    %223 = vmatprep.subr.bf16.mxu0 0
    %224 = vmatpush1.bf16.msra.mxu0 %v205
    %225 = vmatprep.subr.bf16.mxu0 0
    %226 = vmatpush1.bf16.msra.mxu0 %v204
    %227 = vmatprep.subr.bf16.mxu0 0
    %228 = vmatpush1.bf16.msra.mxu0 %v203
    %229 = vmatprep.subr.bf16.mxu0 0
    %230 = vmatpush1.bf16.msra.mxu0 %v202
    %231 = vmatprep.subr.bf16.mxu0 0
    %232 = vmatpush1.bf16.msra.mxu0 %v201
    %233 = vmatprep.subr.bf16.mxu0 0
    %234 = vmatpush2.bf16.msra.mxu0 0
    %235 = vmatprep.subr.bf16.mxu0 0
    %236 = vmatpush2.bf16.msra.mxu0 0
    %237 = vmatprep.subr.bf16.mxu0 0
    %238 = vmatpush2.bf16.msra.mxu0 0
    %239 = vmatprep.subr.bf16.mxu0 0
    %240 = vmatpush2.bf16.msra.mxu0 0
    %241 = vmatprep.subr.bf16.mxu0 0
    %242 = vmatpush2.bf16.msra.mxu0 0
    %243 = vmatprep.subr.bf16.mxu0 0
    %244 = vmatpush2.bf16.msra.mxu0 0
    %245 = vmatprep.subr.bf16.mxu0 0
    %246 = vmatpush2.bf16.msra.mxu0 0
    %247 = vmatprep.subr.bf16.mxu0 0
    %248 = vmatpush2.bf16.msra.mxu0 0
    %249 = vmatprep.mubr.bf16.mxu0 0
    %250 = vmatmul.mubr.bf16.gmra.mxu0 %v116
    %v251 = vpop.f32.mrf.mxu0
    %v252 = vadd.f32 %v165, %v251
    %v253 = vpop.f32.mrf.mxu0
    %v254 = vpop.f32.mrf.mxu0
    %v255 = vadd.f32 %v166, %v254
    %v256 = vpop.f32.mrf.mxu0
    %257 = vmatprep.mubr.bf16.mxu0 0
    %258 = vmatmul.mubr.bf16.gmra.mxu0 %v117
    %v259 = vpop.f32.mrf.mxu0
    %v260 = vadd.f32 %v167, %v259
    %v261 = vpop.f32.mrf.mxu0
    %v262 = vpop.f32.mrf.mxu0
    %v263 = vadd.f32 %v168, %v262
    %v264 = vpop.f32.mrf.mxu0
    %265 = vdwg.mxu0
    %v266 = vmax.f32 %v252, 0.0
    %v267 = vmax.f32 %v255, 0.0
    %v268 = vmax.f32 %v260, 0.0
    %v269 = vmax.f32 %v263, 0.0
    %270 = vst [vmem:[#allocation2] sm:$0xff] %v266
    %271 = vst [vmem:[#allocation2 + $0x8] sm:$0xff] %v267
    %272 = vst [vmem:[#allocation2 + $0x10] sm:$0xff] %v268
    %273 = vst [vmem:[#allocation2 + $0x18] sm:$0xff] %v269
    %v274 = vpack.c.bf16 %v267, %v266
    %v275 = vpack.c.bf16 %v269, %v268
    %v276 = vld [vmem:[%s5] sm:$0xf]
    %v277 = vld [vmem:[%s5 + $0x4] sm:$0xf]
    %v278 = vld [vmem:[%s5 + $0x8] sm:$0xf]
    %v279 = vld [vmem:[%s5 + $0xc] sm:$0xf]
    %v280 = vld [vmem:[%s5 + $0x10] sm:$0xf]
    %v281 = vld [vmem:[%s5 + $0x14] sm:$0xf]
    %v282 = vld [vmem:[%s5 + $0x18] sm:$0xf]
    %v283 = vld [vmem:[%s5 + $0x1c] sm:$0xf]
    %v284 = vld [vmem:[%s5 + $0x20] sm:$0xf]
    %v285 = vld [vmem:[%s5 + $0x24] sm:$0xf]
    %v286 = vld [vmem:[%s5 + $0x28] sm:$0xf]
    %v287 = vld [vmem:[%s5 + $0x2c] sm:$0xf]
    %v288 = vld [vmem:[%s5 + $0x30] sm:$0xf]
    %v289 = vld [vmem:[%s5 + $0x34] sm:$0xf]
    %v290 = vld [vmem:[%s5 + $0x38] sm:$0xf]
    %v291 = vld [vmem:[%s5 + $0x3c] sm:$0xf]
    %v292 = vld [vmem:[%s6] sm:$0x1]
    %v294 = vlaneseq
    %v295 = vshrl.u32 %v294, 7
    %v296 = vsub.s32 0, %v295
    %v297 = vrot.slane %v292, %v296
    %v315 = vunpack.c.l.b16 %v276
    %v316 = vunpack.c.l.b16 %v277
    %v317 = vunpack.c.l.b16 %v278
    %v318 = vunpack.c.l.b16 %v279
    %v319 = vunpack.c.l.b16 %v280
    %v320 = vunpack.c.l.b16 %v281
    %v321 = vunpack.c.l.b16 %v282
    %v322 = vunpack.c.l.b16 %v283
    %v323 = vunpack.c.l.b16 %v284
    %v324 = vunpack.c.l.b16 %v285
    %v325 = vunpack.c.l.b16 %v286
    %v326 = vunpack.c.l.b16 %v287
    %v327 = vunpack.c.l.b16 %v288
    %v328 = vunpack.c.l.b16 %v289
    %v329 = vunpack.c.l.b16 %v290
    %v330 = vunpack.c.l.b16 %v291
    %v331 = vpack.c.b16 %v316, %v315
    %v332 = vpack.c.b16 %v318, %v317
    %v333 = vpack.c.b16 %v320, %v319
    %v334 = vpack.c.b16 %v322, %v321
    %v335 = vpack.c.b16 %v324, %v323
    %v336 = vpack.c.b16 %v326, %v325
    %v337 = vpack.c.b16 %v328, %v327
    %v338 = vpack.c.b16 %v330, %v329
    %347 = vmatprep.subr.bf16.mxu0 0
    %348 = vmatpush1.bf16.msra.mxu0 %v338
    %349 = vmatprep.subr.bf16.mxu0 0
    %350 = vmatpush1.bf16.msra.mxu0 %v337
    %351 = vmatprep.subr.bf16.mxu0 0
    %352 = vmatpush1.bf16.msra.mxu0 %v336
    %353 = vmatprep.subr.bf16.mxu0 0
    %354 = vmatpush1.bf16.msra.mxu0 %v335
    %355 = vmatprep.subr.bf16.mxu0 0
    %356 = vmatpush1.bf16.msra.mxu0 %v334
    %357 = vmatprep.subr.bf16.mxu0 0
    %358 = vmatpush1.bf16.msra.mxu0 %v333
    %359 = vmatprep.subr.bf16.mxu0 0
    %360 = vmatpush1.bf16.msra.mxu0 %v332
    %361 = vmatprep.subr.bf16.mxu0 0
    %362 = vmatpush1.bf16.msra.mxu0 %v331
    %363 = vmatprep.subr.bf16.mxu0 0
    %364 = vmatpush2.bf16.msra.mxu0 0
    %365 = vmatprep.subr.bf16.mxu0 0
    %366 = vmatpush2.bf16.msra.mxu0 0
    %367 = vmatprep.subr.bf16.mxu0 0
    %368 = vmatpush2.bf16.msra.mxu0 0
    %369 = vmatprep.subr.bf16.mxu0 0
    %370 = vmatpush2.bf16.msra.mxu0 0
    %371 = vmatprep.subr.bf16.mxu0 0
    %372 = vmatpush2.bf16.msra.mxu0 0
    %373 = vmatprep.subr.bf16.mxu0 0
    %374 = vmatpush2.bf16.msra.mxu0 0
    %375 = vmatprep.subr.bf16.mxu0 0
    %376 = vmatpush2.bf16.msra.mxu0 0
    %377 = vmatprep.subr.bf16.mxu0 0
    %378 = vmatpush2.bf16.msra.mxu0 0
    %379 = vmatprep.mubr.bf16.mxu0 0
    %380 = vmatmul.mubr.bf16.gmra.mxu0 %v274
    %v381 = vpop.f32.mrf.mxu0
    %v382 = vadd.f32 %v297, %v381
    %v383 = vpop.f32.mrf.mxu0
    %v384 = vpop.f32.mrf.mxu0
    %v385 = vadd.f32 %v297, %v384
    %v386 = vpop.f32.mrf.mxu0
    %387 = vmatprep.mubr.bf16.mxu0 0
    %388 = vmatmul.mubr.bf16.gmra.mxu0 %v275
    %v389 = vpop.f32.mrf.mxu0
    %v390 = vadd.f32 %v297, %v389
    %v391 = vpop.f32.mrf.mxu0
    %v392 = vpop.f32.mrf.mxu0
    %v393 = vadd.f32 %v297, %v392
    %v394 = vpop.f32.mrf.mxu0
    %395 = vdwg.mxu0
    %v396 = vpack.c.bf16 %v385, %v382
    %v397 = vpack.c.bf16 %v393, %v390
    %398 = vmatprep.subr.bf16.mxu0 0
    %399 = vmatpush1.bf16.msra.mxu0 0
    %400 = vmatprep.subr.bf16.mxu0 0
    %401 = vmatpush1.bf16.msra.mxu0 0
    %402 = vmatprep.subr.bf16.mxu0 0
    %403 = vmatpush1.bf16.msra.mxu0 0
    %404 = vmatprep.subr.bf16.mxu0 0
    %405 = vmatpush1.bf16.msra.mxu0 0
    %406 = vmatprep.subr.bf16.mxu0 0
    %407 = vmatpush1.bf16.msra.mxu0 0
    %408 = vmatprep.subr.bf16.mxu0 0
    %409 = vmatpush1.bf16.msra.mxu0 0
    %410 = vmatprep.subr.bf16.mxu0 0
    %411 = vmatpush1.bf16.msra.mxu0 %v397
    %412 = vmatprep.subr.bf16.mxu0 0
    %413 = vmatpush1.bf16.msra.mxu0 %v396
    %414 = vmatprep.subr.bf16.mxu0 0
    %415 = vmatpush2.bf16.msra.mxu0 0
    %416 = vmatprep.subr.bf16.mxu0 0
    %417 = vmatpush2.bf16.msra.mxu0 0
    %418 = vmatprep.subr.bf16.mxu0 0
    %419 = vmatpush2.bf16.msra.mxu0 0
    %420 = vmatprep.subr.bf16.mxu0 0
    %421 = vmatpush2.bf16.msra.mxu0 0
    %422 = vmatprep.subr.bf16.mxu0 0
    %423 = vmatpush2.bf16.msra.mxu0 0
    %424 = vmatprep.subr.bf16.mxu0 0
    %425 = vmatpush2.bf16.msra.mxu0 0
    %426 = vmatprep.subr.bf16.mxu0 0
    %427 = vmatpush2.bf16.msra.mxu0 0
    %428 = vmatprep.subr.bf16.mxu0 0
    %429 = vmatpush2.bf16.msra.mxu0 0
    %430 = vmatprep.mubr.bf16.mxu0 0
    %431 = vmatmul.mubr.bf16.gmra.mxu0 %v62
    %v432 = vpop.f32.mrf.mxu0
    %v433 = vadd.f32 0.0, %v432
    %v434 = vpop.f32.mrf.mxu0
    %v435 = vpop.f32.mrf.mxu0
    %v436 = vadd.f32 0.0, %v435
    %v437 = vpop.f32.mrf.mxu0
    %438 = vmatprep.mubr.bf16.mxu0 0
    %439 = vmatmul.mubr.bf16.gmra.mxu0 %v65
    %v440 = vpop.f32.mrf.mxu0
    %v441 = vadd.f32 0.0, %v440
    %v442 = vpop.f32.mrf.mxu0
    %v443 = vpop.f32.mrf.mxu0
    %v444 = vadd.f32 0.0, %v443
    %v445 = vpop.f32.mrf.mxu0
    %446 = vdwg.mxu0
    %447 = vst [vmem:[%s8] sm:$0xff] %v433
    %448 = vst [vmem:[%s8 + $0x8] sm:$0xff] %v436
    %449 = vst [vmem:[%s8 + $0x10] sm:$0xff] %v441
    %450 = vst [vmem:[%s8 + $0x18] sm:$0xff] %v444
    // Predicated region
    $region30: #{fused_hgnn_forward.1} parent=1 // pred_check
      _
    $region31: #{fused_hgnn_forward.1} parent=1 // pred_check_branch
      %452 = sbr.rel (0) target = $region33
    $region32: #{fused_hgnn_forward.1} parent=1 // pred_region
      %s454 = ssub.s32 512, 512
      %455 = vsyncadd [#allocation3], %s454
      %s456 = sshll.u32 [#allocation2], 4
      %s457 = int_to_ptr.vmem [resolvable:$true] %s456
      %462 = dma.vmem_to_hbm [thread:$0]  %s457, 512, %s7, [#allocation3], 128, 128, 8
    $region33: #{fused_hgnn_forward.1} parent=1 // pred_fallthru
      _
    // Predicated region
    $region34: #{fused_hgnn_forward.1} parent=1 // pred_check
      _
    $region35: #{fused_hgnn_forward.1} parent=1 // pred_check_branch
      %464 = sbr.rel (0) target = $region37
    $region36: #{fused_hgnn_forward.1} parent=1 // pred_region
      _
    $region37: #{fused_hgnn_forward.1} parent=1 // pred_fallthru
      _
    // Predicated region
    $region38: #{fused_hgnn_forward.1} parent=1 // pred_check
      _
    $region39: #{fused_hgnn_forward.1} parent=1 // pred_check_branch
      %466 = sbr.rel (0) target = $region41
    $region40: #{fused_hgnn_forward.1} parent=1 // pred_region
      %467 = dma.done [#allocation3], 512
    $region41: #{fused_hgnn_forward.1} parent=1 // pred_fallthru
      _
    // Predicated region
    $region42: #{fused_hgnn_forward.1} parent=1 // pred_check
      _
    $region43: #{fused_hgnn_forward.1} parent=1 // pred_check_branch
      %469 = sbr.rel (0) target = $region45
    $region44: #{fused_hgnn_forward.1} parent=1 // pred_region
      _
    $region45: #{fused_hgnn_forward.1} parent=1 // pred_fallthru
      _
    %470 = vsyncpa [#allocation3], 1

</llo_original>
